<compile_context>
chip_gen: v7x
topology: tpu7x:2x2x1
jax: 0.10.0
libtpu: 0.0.40
codegen_flags: <defaults>
</compile_context>

<pallas_src>
import functools

import jax
import jax.numpy as jnp
from jax.experimental import pallas as pl
from jax.experimental.pallas import tpu as pltpu


def _round_up(x, m):
    return ((x + m - 1) // m) * m


# ---------------------------------------------------------------------------
# Pallas kernel: fused (policy + value) MLP forward on packed parameter slabs
# ---------------------------------------------------------------------------
def _fused_mlp_kernel(obs_ref, w1_ref, b1_ref, w2_ref, b2_ref, out_ref):
    # obs_ref : (TB, D)        bf16
    # w1_ref  : (D, HT)        bf16   [pw1 | vw1]   (vw1 absent if shared trunk)
    # b1_ref  : (1, HT)        f32    [pb1 | vb1]
    # w2_ref  : (HT, OUT_PAD)  bf16   block-diag [pw2 ; vw2]
    # b2_ref  : (1, OUT_PAD)   f32    [pb2 | vb2]
    # out_ref : (TB, OUT_PAD)  f32    logits in [:, :O], value in [:, O]
    h = jnp.dot(obs_ref[...], w1_ref[...], preferred_element_type=jnp.float32)
    h = jnp.maximum(h + b1_ref[...], 0.0).astype(jnp.bfloat16)
    out_ref[...] = (
        jnp.dot(h, w2_ref[...], preferred_element_type=jnp.float32)
        + b2_ref[...]
    )


# ---------------------------------------------------------------------------
# Parameter packing (host/JAX side, outside the kernel)
# ---------------------------------------------------------------------------
def _pack_params(params, use_shared_value_network):
    D, H = params["pw1"].shape
    O = params["pw2"].shape[1]

    HT = _round_up(H if use_shared_value_network else 2 * H, 128)
    OUT_PAD = max(_round_up(O + 1, 8), 8)   # narrow lane-count output slab

    # ---- layer 1: W1 = [pw1 | vw1], b1 = [pb1 | vb1] ------------------------
    w1 = jnp.zeros((D, HT), jnp.float32)
    w1 = w1.at[:, :H].set(params["pw1"])
    b1 = jnp.zeros((1, HT), jnp.float32)
    b1 = b1.at[:, :H].set(params["pb1"])
    if not use_shared_value_network:
        w1 = w1.at[:, H:2 * H].set(params["vw1"])
        b1 = b1.at[:, H:2 * H].set(params["vb1"])

    # ---- layer 2: W2 block-diagonal, b2 packed ------------------------------
    w2 = jnp.zeros((HT, OUT_PAD), jnp.float32)
    w2 = w2.at[:H, :O].set(params["pw2"])
    if use_shared_value_network:
        # value head reads directly from the (single, shared) policy trunk
        w2 = w2.at[:H, O].set(params["vw2"][:, 0])
    else:
        w2 = w2.at[H:2 * H, O].set(params["vw2"][:, 0])
    b2 = jnp.zeros((1, OUT_PAD), jnp.float32)
    b2 = b2.at[:, :O].set(params["pb2"])
    b2 = b2.at[:, O].set(params["vb2"][0, 0])

    return (w1.astype(jnp.bfloat16), b1,
            w2.astype(jnp.bfloat16), b2, HT, OUT_PAD)


# ---------------------------------------------------------------------------
# Wrapper (equivalent of LazyListenerModelTemplate.forward + value_function)
# ---------------------------------------------------------------------------
def lazy_listener_forward(obs, params, *, use_shared_value_network=False,
                          batch_tile=2048):
    """Fused forward: returns (logits, values) with shapes (B, O) and (B, 1)."""
    B, D = obs.shape
    O = params["pw2"].shape[1]

    w1, b1, w2, b2, HT, OUT_PAD = _pack_params(params, use_shared_value_network)

    # --- batch tile selection ------------------------------------------------
    TB = min(batch_tile, B)
    if B > 16:                      # >= 2 grid steps so v7x megacore can shard
        TB = min(TB, -(-B // 2))
    TB = _round_up(max(TB, 1), 16)  # bf16 sublane packing (multiple of 16)
    B_pad = _round_up(B, TB)

    obs_bf = obs.astype(jnp.bfloat16)
    if B_pad != B:
        obs_bf = jnp.pad(obs_bf, ((0, B_pad - B), (0, 0)))

    cost = pl.CostEstimate(
        flops=2 * B_pad * (D * HT + HT * OUT_PAD),
        transcendentals=0,
        bytes_accessed=(obs_bf.size * 2 + int(w1.size) * 2 + int(w2.size) * 2
                        + int(b1.size) * 4 + int(b2.size) * 4
                        + B_pad * OUT_PAD * 4),
    )

    out_slab = pl.pallas_call(
        _fused_mlp_kernel,
        out_shape=jax.ShapeDtypeStruct((B_pad, OUT_PAD), jnp.float32),
        grid=(B_pad // TB,),
        in_specs=[
            pl.BlockSpec((TB, D), lambda i: (i, 0)),          # obs tile (raw)
            pl.BlockSpec((D, HT), lambda i: (0, 0)),          # W1 (resident)
            pl.BlockSpec((1, HT), lambda i: (0, 0)),          # b1 (resident)
            pl.BlockSpec((HT, OUT_PAD), lambda i: (0, 0)),    # W2 (resident)
            pl.BlockSpec((1, OUT_PAD), lambda i: (0, 0)),     # b2 (resident)
        ],
        out_specs=pl.BlockSpec((TB, OUT_PAD), lambda i: (i, 0)),
        compiler_params=pltpu.CompilerParams(
            dimension_semantics=("parallel",),   # megacore on v7x
            vmem_limit_bytes=32 << 20,           # safe on v5e/v6e/v7x
        ),
        cost_estimate=cost,
    )(obs_bf, w1, b1, w2, b2)

    logits = out_slab[:B, :O]
    values = out_slab[:B, O:O + 1]
    assert logits.shape[-1] == O, "Number of outputs is not valid"
    return logits, values


# ---------------------------------------------------------------------------
# Deterministic parameter construction (synthetic; no checkpoint loading)
# ---------------------------------------------------------------------------
def init_params(key, obs_dim, hidden, num_outputs):
    ks = jax.random.split(key, 8)
    scale = lambda fan_in: 1.0 / jnp.sqrt(jnp.float32(fan_in))
    return {
        # policy network
        "pw1": jax.random.normal(ks[0], (obs_dim, hidden), jnp.float32) * scale(obs_dim),
        "pb1": jax.random.normal(ks[1], (1, hidden), jnp.float32) * 0.01,
        "pw2": jax.random.normal(ks[2], (hidden, num_outputs), jnp.float32) * scale(hidden),
        "pb2": jax.random.normal(ks[3], (1, num_outputs), jnp.float32) * 0.01,
        # value network
        "vw1": jax.random.normal(ks[4], (obs_dim, hidden), jnp.float32) * scale(obs_dim),
        "vb1": jax.random.normal(ks[5], (1, hidden), jnp.float32) * 0.01,
        "vw2": jax.random.normal(ks[6], (hidden, 1), jnp.float32) * scale(hidden),
        "vb2": jax.random.normal(ks[7], (1, 1), jnp.float32) * 0.01,
    }


# Pure-JAX (f32) reference for the correctness check.
def _reference_forward(obs, params, *, use_shared_value_network=False):
    h = jnp.maximum(obs @ params["pw1"] + params["pb1"], 0.0)
    logits = h @ params["pw2"] + params["pb2"]
    hv = h if use_shared_value_network else jnp.maximum(
        obs @ params["vw1"] + params["vb1"], 0.0)
    values = hv @ params["vw2"] + params["vb2"]
    return logits, values


if __name__ == "__main__":
    B, OBS_DIM, HIDDEN, NUM_OUTPUTS = 128, 32, 32, 8

    key = jax.random.PRNGKey(0)
    k_obs, k_params = jax.random.split(key)

    obs = jax.random.normal(k_obs, (B, OBS_DIM), jnp.float32)
    params = init_params(k_params, OBS_DIM, HIDDEN, NUM_OUTPUTS)

    # bf16 weights/activations with f32 accumulation -> loosen tolerance.
    TOL = dict(atol=5e-2, rtol=5e-2)

    # ---- separate value network path ---------------------------------------
    fwd = jax.jit(functools.partial(lazy_listener_forward,
                                    use_shared_value_network=False))
    logits, values = fwd(obs, params)
    jax.block_until_ready((logits, values))
    ref_logits, ref_values = _reference_forward(
        obs, params, use_shared_value_network=False)
    assert logits.shape == (B, NUM_OUTPUTS)
    assert values.shape == (B, 1)
    assert jnp.allclose(logits, ref_logits, **TOL)
    assert jnp.allclose(values, ref_values, **TOL)

    # ---- shared value network path (value head reuses the policy trunk) ----
    fwd_shared = jax.jit(functools.partial(lazy_listener_forward,
                                           use_shared_value_network=True))
    logits_s, values_s = fwd_shared(obs, params)
    jax.block_until_ready((logits_s, values_s))
    ref_logits_s, ref_values_s = _reference_forward(
        obs, params, use_shared_value_network=True)
    assert jnp.allclose(logits_s, ref_logits_s, **TOL)
    assert jnp.allclose(values_s, ref_values_s, **TOL)

    # TODO(synk): the abstract hooks (_validate_config / _validate_observation /
    # RNN state passthrough in `state`) are host-side bookkeeping with no kernel
    # equivalent.
    print("KERNEL_OK")
</pallas_src>

<mosaic_0001>
module attributes {stable_mosaic.version = 11 : i64} {
  func.func @_fused_mlp_kernel(%arg0: i32, %arg1: memref<64x32xbf16, #tpu.memory_space<vmem>>, %arg2: memref<32x128xbf16, #tpu.memory_space<vmem>>, %arg3: memref<1x128xf32, #tpu.memory_space<vmem>>, %arg4: memref<128x16xbf16, #tpu.memory_space<vmem>>, %arg5: memref<1x16xf32, #tpu.memory_space<vmem>>, %arg6: memref<64x16xf32, #tpu.memory_space<vmem>>) attributes {dimension_semantics = [#tpu.dimension_semantics<parallel>], iteration_bounds = array<i64: 2>, scalar_prefetch = 0 : i64, scratch_operands = 0 : i64, tpu.core_type = #tpu.core_type<tc>, window_params = [{transform_indices = @transform_0, window_bounds = array<i64: 64, 32>}, {pipeline_mode = #tpu.pipeline_mode<synchronous>, transform_indices = @transform_1, window_bounds = array<i64: 32, 128>}, {pipeline_mode = #tpu.pipeline_mode<synchronous>, transform_indices = @transform_2, window_bounds = array<i64: 1, 128>}, {pipeline_mode = #tpu.pipeline_mode<synchronous>, transform_indices = @transform_3, window_bounds = array<i64: 128, 16>}, {pipeline_mode = #tpu.pipeline_mode<synchronous>, transform_indices = @transform_4, window_bounds = array<i64: 1, 16>}, {transform_indices = @transform_5, window_bounds = array<i64: 64, 16>}]} {
    %c0 = arith.constant 0 : index
    %c0_0 = arith.constant 0 : index
    %0 = vector.load %arg1[%c0, %c0_0] : memref<64x32xbf16, #tpu.memory_space<vmem>>, vector<64x32xbf16>
    %c0_1 = arith.constant 0 : index
    %c0_2 = arith.constant 0 : index
    %1 = vector.load %arg2[%c0_1, %c0_2] : memref<32x128xbf16, #tpu.memory_space<vmem>>, vector<32x128xbf16>
    %cst = arith.constant dense<0.000000e+00> : vector<64x128xf32>
    %2 = tpu.matmul %0, %1, %cst {dimension_numbers = #tpu.dot_dimension_numbers<[1], [0], [0], [1], [0, 0, 1, 1], [], []>} : vector<64x32xbf16>, vector<32x128xbf16>, vector<64x128xf32> -> vector<64x128xf32>
    %c0_3 = arith.constant 0 : index
    %c0_4 = arith.constant 0 : index
    %3 = vector.load %arg3[%c0_3, %c0_4] : memref<1x128xf32, #tpu.memory_space<vmem>>, vector<1x128xf32>
    %4 = vector.broadcast %3 : vector<1x128xf32> to vector<64x128xf32>
    %5 = arith.addf %2, %4 : vector<64x128xf32>
    %cst_5 = arith.constant 0.000000e+00 : f32
    %6 = vector.broadcast %cst_5 : f32 to vector<64x128xf32>
    %7 = arith.maximumf %5, %6 : vector<64x128xf32>
    %8 = arith.truncf %7 : vector<64x128xf32> to vector<64x128xbf16>
    %c0_6 = arith.constant 0 : index
    %c0_7 = arith.constant 0 : index
    %9 = vector.load %arg4[%c0_6, %c0_7] : memref<128x16xbf16, #tpu.memory_space<vmem>>, vector<128x16xbf16>
    %cst_8 = arith.constant dense<0.000000e+00> : vector<64x16xf32>
    %10 = tpu.matmul %8, %9, %cst_8 {dimension_numbers = #tpu.dot_dimension_numbers<[1], [0], [0], [1], [0, 0, 1, 1], [], []>} : vector<64x128xbf16>, vector<128x16xbf16>, vector<64x16xf32> -> vector<64x16xf32>
    %c0_9 = arith.constant 0 : index
    %c0_10 = arith.constant 0 : index
    %11 = vector.load %arg5[%c0_9, %c0_10] : memref<1x16xf32, #tpu.memory_space<vmem>>, vector<1x16xf32>
    %12 = vector.broadcast %11 : vector<1x16xf32> to vector<64x16xf32>
    %13 = arith.addf %10, %12 : vector<64x16xf32>
    %c0_11 = arith.constant 0 : index
    %c0_12 = arith.constant 0 : index
    %14 = vector.load %arg6[%c0_11, %c0_12] : memref<64x16xf32, #tpu.memory_space<vmem>>, vector<64x16xf32>
    tpu.vector_store %arg6[%c0_11, %c0_12], %13 {strides = array<i32>} : memref<64x16xf32, #tpu.memory_space<vmem>>, vector<64x16xf32>,
    return
  }
  func.func @transform_0(%arg0: i32) -> (i32, i32) {
    %c0_i32 = arith.constant 0 : i32
    %c0_i32_0 = arith.constant 0 : i32
    return %arg0, %c0_i32 : i32, i32
  }
  func.func @transform_1(%arg0: i32) -> (i32, i32) {
    %c0_i32 = arith.constant 0 : i32
    %c0_i32_0 = arith.constant 0 : i32
    %c0_i32_1 = arith.constant 0 : i32
    return %c0_i32, %c0_i32_0 : i32, i32
  }
  func.func @transform_2(%arg0: i32) -> (i32, i32) {
    %c0_i32 = arith.constant 0 : i32
    %c0_i32_0 = arith.constant 0 : i32
    %c0_i32_1 = arith.constant 0 : i32
    return %c0_i32, %c0_i32_0 : i32, i32
  }
  func.func @transform_3(%arg0: i32) -> (i32, i32) {
    %c0_i32 = arith.constant 0 : i32
    %c0_i32_0 = arith.constant 0 : i32
    %c0_i32_1 = arith.constant 0 : i32
    return %c0_i32, %c0_i32_0 : i32, i32
  }
  func.func @transform_4(%arg0: i32) -> (i32, i32) {
    %c0_i32 = arith.constant 0 : i32
    %c0_i32_0 = arith.constant 0 : i32
    %c0_i32_1 = arith.constant 0 : i32
    return %c0_i32, %c0_i32_0 : i32, i32
  }
  func.func @transform_5(%arg0: i32) -> (i32, i32) {
    %c0_i32 = arith.constant 0 : i32
    %c0_i32_0 = arith.constant 0 : i32
    return %arg0, %c0_i32 : i32, i32
  }
}

</mosaic_0001>

<llo_original>
// kernel: lazy_listener_forward.1
$region0: #{lazy_listener_forward.1}
  #allocation0 [shape = 'u32[]', space=smem, size = 0x4, offset = 0x4, fixed_abs, tag = 'smem constant byte address 0x4 - core index']
  #allocation1 [shape = 'u32[144,128]{1,0:T(1,128)}', space=vmem, size = 0x12000, scoped, tag = 'internal scratch']
  %s0 = inlined_call_operand.vmem [shape: bf16[128,32], index: 0, kind: input, shape index: {}]
  %s1 = inlined_call_operand.vmem [shape: bf16[32,128], index: 1, kind: input, shape index: {}]
  %s2 = inlined_call_operand.vmem [shape: f32[1,128], index: 2, kind: input, shape index: {}]
  %s3 = inlined_call_operand.vmem [shape: bf16[128,16], index: 3, kind: input, shape index: {}]
  %s4 = inlined_call_operand.vmem [shape: f32[1,16], index: 4, kind: input, shape index: {}]
  %s5 = inlined_call_operand.vmem [shape: f32[128,16], index: 5, kind: output, shape index: {}]
  %s6 = sld [smem:[#allocation0]]
  $region53: #{lazy_listener_forward.1} parent=0
    _
  %s8 = ssub.s32 1, %s6
  %s9 = scalar_select 0, %s8, %s6
  loop: start=0, step=1, limit=4
  $region2: #{lazy_listener_forward.1} parent=0 // loop_pre_header
    _
  $region3: #{lazy_listener_forward.1} parent=0 // loop_header
    %s11 = sphi 0, %s15
    %p12 = scmp.ge.s32.totalorder %s11, 4
    %s21 = sphi 0, %s23
    %s24 = sphi 0, %s21
    %s25 = sphi 0, %s24
    %s41 = sphi 0, %s25
    %s45 = sphi 0, %s45
    %s47 = sphi 0, %s45
    %s48 = sphi 0, %s47
    %s62 = sphi 0, %s48
    %s66 = sphi 0, %s66
    %s68 = sphi 0, %s66
    %s69 = sphi 0, %s68
    %s83 = sphi 0, %s69
    %s87 = sphi 0, %s87
    %s89 = sphi 0, %s87
    %s90 = sphi 0, %s89
    %s104 = sphi 0, %s90
    %s108 = sphi 0, %s108
    %s110 = sphi 0, %s108
    %s111 = sphi 0, %s110
    %s125 = sphi 0, %s111
    %s131 = sphi 0, %s133
    %s134 = sphi 0, %s131
    %s135 = sphi 0, %s134
    %s151 = sphi 0, %s135
  $region4: #{lazy_listener_forward.1} parent=0 // loop_header_branch
    %14 = sbr.rel (%p12) target = $region8
  $region5: #{lazy_listener_forward.1} parent=0 // loop_body
    %s16 = ssub.s32 %s11, 1
    %s17 = ssub.s32 %s11, 2
    %s18 = sadd.s32 %s11, 1
    %s19 = ssub.s32 %s11, %s18
    %p20 = scmp.eq.s32.totalorder %s19, 0
    %s22 = sadd.s32 %s21, 1
    %s23 = scalar_select %p20, %s21, %s22
    %p26 = pneg %p20
    %p27 = scmp.eq.s32.totalorder %s11, 1
    %p28 = por %p26, %p27
    %p29 = scmp.ne.s32.totalorder %s21, %s24
    %p30 = scmp.eq.s32.totalorder %s11, 0
    %p31 = por %p29, %p30
    %p32 = scmp.ne.s32.totalorder %s21, %s24
    %p33 = scmp.eq.s32.totalorder %s16, 1
    %p34 = por %p32, %p33
    %p35 = scmp.ne.s32.totalorder %s24, %s25
    %p36 = scmp.eq.s32.totalorder %s16, 0
    %p37 = por %p35, %p36
    %p38 = scmp.ne.s32.totalorder %s24, %s25
    %p39 = scmp.eq.s32.totalorder %s17, 1
    %p40 = por %p38, %p39
    %p42 = scmp.ne.s32.totalorder %s25, %s41
    %p43 = scmp.eq.s32.totalorder %s17, 0
    %p44 = por %p42, %p43
    %s46 = sadd.s32 %s45, 1
    %p49 = scmp.eq.s32.totalorder %s11, 1
    %p50 = scmp.ne.s32.totalorder %s45, %s47
    %p51 = scmp.eq.s32.totalorder %s11, 0
    %p52 = por %p50, %p51
    %p53 = scmp.ne.s32.totalorder %s45, %s47
    %p54 = scmp.eq.s32.totalorder %s16, 1
    %p55 = por %p53, %p54
    %p56 = scmp.ne.s32.totalorder %s47, %s48
    %p57 = scmp.eq.s32.totalorder %s16, 0
    %p58 = por %p56, %p57
    %p59 = scmp.ne.s32.totalorder %s47, %s48
    %p60 = scmp.eq.s32.totalorder %s17, 1
    %p61 = por %p59, %p60
    %p63 = scmp.ne.s32.totalorder %s48, %s62
    %p64 = scmp.eq.s32.totalorder %s17, 0
    %p65 = por %p63, %p64
    %s67 = sadd.s32 %s66, 1
    %p70 = scmp.eq.s32.totalorder %s11, 1
    %p71 = scmp.ne.s32.totalorder %s66, %s68
    %p72 = scmp.eq.s32.totalorder %s11, 0
    %p73 = por %p71, %p72
    %p74 = scmp.ne.s32.totalorder %s66, %s68
    %p75 = scmp.eq.s32.totalorder %s16, 1
    %p76 = por %p74, %p75
    %p77 = scmp.ne.s32.totalorder %s68, %s69
    %p78 = scmp.eq.s32.totalorder %s16, 0
    %p79 = por %p77, %p78
    %p80 = scmp.ne.s32.totalorder %s68, %s69
    %p81 = scmp.eq.s32.totalorder %s17, 1
    %p82 = por %p80, %p81
    %p84 = scmp.ne.s32.totalorder %s69, %s83
    %p85 = scmp.eq.s32.totalorder %s17, 0
    %p86 = por %p84, %p85
    %s88 = sadd.s32 %s87, 1
    %p91 = scmp.eq.s32.totalorder %s11, 1
    %p92 = scmp.ne.s32.totalorder %s87, %s89
    %p93 = scmp.eq.s32.totalorder %s11, 0
    %p94 = por %p92, %p93
    %p95 = scmp.ne.s32.totalorder %s87, %s89
    %p96 = scmp.eq.s32.totalorder %s16, 1
    %p97 = por %p95, %p96
    %p98 = scmp.ne.s32.totalorder %s89, %s90
    %p99 = scmp.eq.s32.totalorder %s16, 0
    %p100 = por %p98, %p99
    %p101 = scmp.ne.s32.totalorder %s89, %s90
    %p102 = scmp.eq.s32.totalorder %s17, 1
    %p103 = por %p101, %p102
    %p105 = scmp.ne.s32.totalorder %s90, %s104
    %p106 = scmp.eq.s32.totalorder %s17, 0
    %p107 = por %p105, %p106
    %s109 = sadd.s32 %s108, 1
    %p112 = scmp.eq.s32.totalorder %s11, 1
    %p113 = scmp.ne.s32.totalorder %s108, %s110
    %p114 = scmp.eq.s32.totalorder %s11, 0
    %p115 = por %p113, %p114
    %p116 = scmp.ne.s32.totalorder %s108, %s110
    %p117 = scmp.eq.s32.totalorder %s16, 1
    %p118 = por %p116, %p117
    %p119 = scmp.ne.s32.totalorder %s110, %s111
    %p120 = scmp.eq.s32.totalorder %s16, 0
    %p121 = por %p119, %p120
    %p122 = scmp.ne.s32.totalorder %s110, %s111
    %p123 = scmp.eq.s32.totalorder %s17, 1
    %p124 = por %p122, %p123
    %p126 = scmp.ne.s32.totalorder %s111, %s125
    %p127 = scmp.eq.s32.totalorder %s17, 0
    %p128 = por %p126, %p127
    %s129 = ssub.s32 %s11, %s18
    %p130 = scmp.eq.s32.totalorder %s129, 0
    %s132 = sadd.s32 %s131, 1
    %s133 = scalar_select %p130, %s131, %s132
    %p136 = pneg %p130
    %p137 = scmp.eq.s32.totalorder %s11, 1
    %p138 = por %p136, %p137
    %p139 = scmp.ne.s32.totalorder %s131, %s134
    %p140 = scmp.eq.s32.totalorder %s11, 0
    %p141 = por %p139, %p140
    %p142 = scmp.ne.s32.totalorder %s131, %s134
    %p143 = scmp.eq.s32.totalorder %s16, 1
    %p144 = por %p142, %p143
    %p145 = scmp.ne.s32.totalorder %s134, %s135
    %p146 = scmp.eq.s32.totalorder %s16, 0
    %p147 = por %p145, %p146
    %p148 = scmp.ne.s32.totalorder %s134, %s135
    %p149 = scmp.eq.s32.totalorder %s17, 1
    %p150 = por %p148, %p149
    %p152 = scmp.ne.s32.totalorder %s135, %s151
    %p153 = scmp.eq.s32.totalorder %s17, 0
    %p154 = por %p152, %p153
    %p155 = scmp.le.s32.totalorder 1, %s11
    %p156 = scmp.lt.s32.totalorder %s11, 3
    %p157 = pnand %p155, %p156
    %p158 = pneg %p157
    // Predicated region
    $region9: #{lazy_listener_forward.1} parent=5 // pred_check
      _
    $region10: #{lazy_listener_forward.1} parent=5 // pred_check_branch
      %160 = sbr.rel (%p157) target = $region12
    $region11: #{lazy_listener_forward.1} parent=5 // pred_region
      %s161 = ssub.s32 %s11, 1
      // Predicated region
      $region13: #{lazy_listener_forward.1} parent=11 // pred_check
        %p162 = pneg %p58
      $region14: #{lazy_listener_forward.1} parent=11 // pred_check_branch
        %164 = sbr.rel (%p162) target = $region16
      $region15: #{lazy_listener_forward.1} parent=11 // pred_region
        _
      $region16: #{lazy_listener_forward.1} parent=11 // pred_fallthru
        _
      // Predicated region
      $region17: #{lazy_listener_forward.1} parent=11 // pred_check
        %p165 = pneg %p79
      $region18: #{lazy_listener_forward.1} parent=11 // pred_check_branch
        %167 = sbr.rel (%p165) target = $region20
      $region19: #{lazy_listener_forward.1} parent=11 // pred_region
        _
      $region20: #{lazy_listener_forward.1} parent=11 // pred_fallthru
        _
      // Predicated region
      $region21: #{lazy_listener_forward.1} parent=11 // pred_check
        %p168 = pneg %p100
      $region22: #{lazy_listener_forward.1} parent=11 // pred_check_branch
        %170 = sbr.rel (%p168) target = $region24
      $region23: #{lazy_listener_forward.1} parent=11 // pred_region
        _
      $region24: #{lazy_listener_forward.1} parent=11 // pred_fallthru
        _
      // Predicated region
      $region25: #{lazy_listener_forward.1} parent=11 // pred_check
        %p171 = pneg %p121
      $region26: #{lazy_listener_forward.1} parent=11 // pred_check_branch
        %173 = sbr.rel (%p171) target = $region28
      $region27: #{lazy_listener_forward.1} parent=11 // pred_region
        _
      $region28: #{lazy_listener_forward.1} parent=11 // pred_fallthru
        _
    $region12: #{lazy_listener_forward.1} parent=5 // pred_fallthru
      _
    %p174 = scmp.lt.s32.totalorder %s11, 2
    // Predicated region
    $region29: #{lazy_listener_forward.1} parent=5 // pred_check
      %p175 = pneg %p174
    $region30: #{lazy_listener_forward.1} parent=5 // pred_check_branch
      %177 = sbr.rel (%p175) target = $region32
    $region31: #{lazy_listener_forward.1} parent=5 // pred_region
      // Predicated region
      $region33: #{lazy_listener_forward.1} parent=31 // pred_check
        %p178 = pneg %p31
      $region34: #{lazy_listener_forward.1} parent=31 // pred_check_branch
        %180 = sbr.rel (%p178) target = $region36
      $region35: #{lazy_listener_forward.1} parent=31 // pred_region
        %s181 = smul.u32 8, %s11
        %p182 = scmp.lt.s32.totalorder %s181, 15
        %s183 = scalar_select %p182, %s181, 15
        %s184 = smul.addr %s183, 4
        %s185 = scalar_lea.vmem %s0, %s184
        %s186 = smul.u32 8, %s11
      $region36: #{lazy_listener_forward.1} parent=31 // pred_fallthru
        _
    $region32: #{lazy_listener_forward.1} parent=5 // pred_fallthru
      _
    %p187 = scmp.le.s32.totalorder 1, %s11
    %p188 = scmp.lt.s32.totalorder %s11, 3
    %p189 = pnand %p187, %p188
    %p190 = pneg %p189
    // Predicated region
    $region37: #{lazy_listener_forward.1} parent=5 // pred_check
      _
    $region38: #{lazy_listener_forward.1} parent=5 // pred_check_branch
      %192 = sbr.rel (%p189) target = $region40
    $region39: #{lazy_listener_forward.1} parent=5 // pred_region
      %s193 = ssub.s32 %s11, 1
      %s194 = smul.u32 8, %s16
      %p195 = scmp.lt.s32.totalorder %s194, 15
      %s196 = scalar_select %p195, %s194, 15
      %s197 = smul.addr %s196, 4
      %s198 = scalar_lea.vmem %s0, %s197
      %p199 = pneg %p37
      %p200 = pneg %p34
      %p201 = pneg %p58
      %p202 = pneg %p55
      %p203 = pneg %p79
      %p204 = pneg %p76
      %p205 = pneg %p100
      %p206 = pneg %p97
      %p207 = pneg %p121
      %p208 = pneg %p118
      %p209 = pneg %p147
      %p210 = pneg %p144
      %s211 = smul.u32 8, %s16
      %p212 = scmp.lt.s32.totalorder %s211, 15
      %s213 = scalar_select %p212, %s211, 15
      %s214 = smul.addr %s213, 8
      %s215 = scalar_lea.vmem %s5, %s214
      %s216 = smul.u32 8, %s16
      %p217 = scmp.lt.s32.totalorder %s216, 15
      %s218 = scalar_select %p217, %s216, 15
      %s219 = smul.addr %s218, 4
      %s220 = scalar_lea.vmem %s0, %s219
      %s221 = smul.u32 8, %s16
      %s222 = smul.u32 8, %s16
      %p223 = scmp.lt.s32.totalorder %s222, 15
      %s224 = scalar_select %p223, %s222, 15
      %s225 = smul.addr %s224, 8
      %s226 = scalar_lea.vmem %s5, %s225
      %s227 = smul.u32 8, %s16
      %v229 = vld [vmem:[%s220] sm:$0xf]
      %v230 = vld [vmem:[%s220 + $0x4] sm:$0xf]
      %v231 = vld [vmem:[%s220 + $0x8] sm:$0xf]
      %v232 = vld [vmem:[%s220 + $0xc] sm:$0xf]
      %v233 = vld [vmem:[%s220 + $0x10] sm:$0xf]
      %v234 = vld [vmem:[%s220 + $0x14] sm:$0xf]
      %v235 = vld [vmem:[%s220 + $0x18] sm:$0xf]
      %v236 = vld [vmem:[%s220 + $0x1c] sm:$0xf]
      %v237 = vld [vmem:[%s1] sm:$0xf]
      %v238 = vld [vmem:[%s1 + $0x4] sm:$0xf]
      %v239 = vld [vmem:[%s1 + $0x8] sm:$0xf]
      %v240 = vld [vmem:[%s1 + $0xc] sm:$0xf]
      %v241 = vld [vmem:[%s2] sm:$0x1]
      %v243 = vlaneseq
      %v244 = vshrl.u32 %v243, 7
      %v245 = vsub.s32 0, %v244
      %v246 = vrot.slane %v241, %v245
      %v256 = vunpack.c.l.b16 %v229
      %v257 = vunpack.c.l.b16 %v230
      %v258 = vunpack.c.l.b16 %v231
      %v259 = vunpack.c.l.b16 %v232
      %v260 = vunpack.c.l.b16 %v233
      %v261 = vunpack.c.l.b16 %v234
      %v262 = vunpack.c.l.b16 %v235
      %v263 = vunpack.c.l.b16 %v236
      %v264 = vpack.c.b16 %v257, %v256
      %v265 = vpack.c.b16 %v259, %v258
      %v266 = vpack.c.b16 %v261, %v260
      %v267 = vpack.c.b16 %v263, %v262
      %v272 = vunpack.c.l.b16 %v237
      %v273 = vunpack.c.l.b16 %v238
      %v274 = vunpack.c.l.b16 %v239
      %v275 = vunpack.c.l.b16 %v240
      %v276 = vpack.c.b16 %v273, %v272
      %v277 = vpack.c.b16 %v275, %v274
      %vm280 = vcmask 261120
      %v282 = vsel %vm280, %v264, 0
      %v285 = vsel %vm280, %v265, 0
      %v288 = vsel %vm280, %v266, 0
      %v291 = vsel %vm280, %v267, 0
      %293 = vmatprep.subr.bf16.mxu0 0
      %294 = vmatpush1.bf16.msra.mxu0 %v276
      %295 = vmatprep.subr.bf16.mxu0 0
      %296 = vmatpush1.bf16.msra.mxu0 %v277
      %297 = vmatprep.subr.bf16.mxu0 0
      %298 = vmatpush1.bf16.msra.mxu0 0
      %299 = vmatprep.subr.bf16.mxu0 0
      %300 = vmatpush1.bf16.msra.mxu0 0
      %301 = vmatprep.subr.bf16.mxu0 0
      %302 = vmatpush1.bf16.msra.mxu0 0
      %303 = vmatprep.subr.bf16.mxu0 0
      %304 = vmatpush1.bf16.msra.mxu0 0
      %305 = vmatprep.subr.bf16.mxu0 0
      %306 = vmatpush1.bf16.msra.mxu0 0
      %307 = vmatprep.subr.bf16.mxu0 0
      %308 = vmatpush1.bf16.msra.mxu0 0
      %309 = vmatprep.subr.bf16.mxu0 0
      %310 = vmatpush1.bf16.msra.mxu0 0
      %311 = vmatprep.subr.bf16.mxu0 0
      %312 = vmatpush1.bf16.msra.mxu0 0
      %313 = vmatprep.subr.bf16.mxu0 0
      %314 = vmatpush1.bf16.msra.mxu0 0
      %315 = vmatprep.subr.bf16.mxu0 0
      %316 = vmatpush1.bf16.msra.mxu0 0
      %317 = vmatprep.subr.bf16.mxu0 0
      %318 = vmatpush1.bf16.msra.mxu0 0
      %319 = vmatprep.subr.bf16.mxu0 0
      %320 = vmatpush1.bf16.msra.mxu0 0
      %321 = vmatprep.subr.bf16.mxu0 0
      %322 = vmatpush1.bf16.msra.mxu0 0
      %323 = vmatprep.subr.bf16.mxu0 0
      %324 = vmatpush1.bf16.msra.mxu0 0
      %325 = vmatprep.mubr.bf16.mxu0 0
      %326 = vmatmul.mubr.bf16.gmra.mrb[0].mxu0 %v282
      %v327 = vpop.f32.mrb[0].mxu0
      %v328 = vadd.f32 %v246, %v327
      %v329 = vpop.f32.mrb[0].mxu0
      %v330 = vpop.f32.mrb[0].mxu0
      %v331 = vadd.f32 %v246, %v330
      %v332 = vpop.f32.mrb[0].mxu0
      %333 = vmatprep.mubr.bf16.mxu0 0
      %334 = vmatmul.mubr.bf16.gmra.mrb[0].mxu0 %v285
      %v335 = vpop.f32.mrb[0].mxu0
      %v336 = vadd.f32 %v246, %v335
      %v337 = vpop.f32.mrb[0].mxu0
      %v338 = vpop.f32.mrb[0].mxu0
      %v339 = vadd.f32 %v246, %v338
      %v340 = vpop.f32.mrb[0].mxu0
      %341 = vmatprep.mubr.bf16.mxu0 0
      %342 = vmatmul.mubr.bf16.gmra.mrb[0].mxu0 %v288
      %v343 = vpop.f32.mrb[0].mxu0
      %v344 = vadd.f32 %v246, %v343
      %v345 = vpop.f32.mrb[0].mxu0
      %v346 = vpop.f32.mrb[0].mxu0
      %v347 = vadd.f32 %v246, %v346
      %v348 = vpop.f32.mrb[0].mxu0
      %349 = vmatprep.mubr.bf16.mxu0 0
      %350 = vmatmul.mubr.bf16.gmra.mrb[0].mxu0 %v291
      %v351 = vpop.f32.mrb[0].mxu0
      %v352 = vadd.f32 %v246, %v351
      %v353 = vpop.f32.mrb[0].mxu0
      %v354 = vpop.f32.mrb[0].mxu0
      %v355 = vadd.f32 %v246, %v354
      %v356 = vpop.f32.mrb[0].mxu0
      %357 = vdwg.mxu0
      %v358 = vmax.f32 %v328, 0.0
      %v359 = vmax.f32 %v331, 0.0
      %v360 = vmax.f32 %v336, 0.0
      %v361 = vmax.f32 %v339, 0.0
      %v362 = vmax.f32 %v344, 0.0
      %v363 = vmax.f32 %v347, 0.0
      %v364 = vmax.f32 %v352, 0.0
      %v365 = vmax.f32 %v355, 0.0
      %v366 = vpack.c.bf16 %v359, %v358
      %v367 = vpack.c.bf16 %v361, %v360
      %v368 = vpack.c.bf16 %v363, %v362
      %v369 = vpack.c.bf16 %v365, %v364
      %v370 = vld [vmem:[%s3] sm:$0xf]
      %v371 = vld [vmem:[%s3 + $0x4] sm:$0xf]
      %v372 = vld [vmem:[%s3 + $0x8] sm:$0xf]
      %v373 = vld [vmem:[%s3 + $0xc] sm:$0xf]
      %v374 = vld [vmem:[%s3 + $0x10] sm:$0xf]
      %v375 = vld [vmem:[%s3 + $0x14] sm:$0xf]
      %v376 = vld [vmem:[%s3 + $0x18] sm:$0xf]
      %v377 = vld [vmem:[%s3 + $0x1c] sm:$0xf]
      %v378 = vld [vmem:[%s3 + $0x20] sm:$0xf]
      %v379 = vld [vmem:[%s3 + $0x24] sm:$0xf]
      %v380 = vld [vmem:[%s3 + $0x28] sm:$0xf]
      %v381 = vld [vmem:[%s3 + $0x2c] sm:$0xf]
      %v382 = vld [vmem:[%s3 + $0x30] sm:$0xf]
      %v383 = vld [vmem:[%s3 + $0x34] sm:$0xf]
      %v384 = vld [vmem:[%s3 + $0x38] sm:$0xf]
      %v385 = vld [vmem:[%s3 + $0x3c] sm:$0xf]
      %v386 = vld [vmem:[%s4] sm:$0x1]
      %v388 = vlaneseq
      %v389 = vshrl.u32 %v388, 7
      %v390 = vsub.s32 0, %v389
      %v391 = vrot.slane %v386, %v390
      %v409 = vunpack.c.l.b16 %v370
      %v410 = vunpack.c.l.b16 %v371
      %v411 = vunpack.c.l.b16 %v372
      %v412 = vunpack.c.l.b16 %v373
      %v413 = vunpack.c.l.b16 %v374
      %v414 = vunpack.c.l.b16 %v375
      %v415 = vunpack.c.l.b16 %v376
      %v416 = vunpack.c.l.b16 %v377
      %v417 = vunpack.c.l.b16 %v378
      %v418 = vunpack.c.l.b16 %v379
      %v419 = vunpack.c.l.b16 %v380
      %v420 = vunpack.c.l.b16 %v381
      %v421 = vunpack.c.l.b16 %v382
      %v422 = vunpack.c.l.b16 %v383
      %v423 = vunpack.c.l.b16 %v384
      %v424 = vunpack.c.l.b16 %v385
      %v425 = vpack.c.b16 %v410, %v409
      %v426 = vpack.c.b16 %v412, %v411
      %v427 = vpack.c.b16 %v414, %v413
      %v428 = vpack.c.b16 %v416, %v415
      %v429 = vpack.c.b16 %v418, %v417
      %v430 = vpack.c.b16 %v420, %v419
      %v431 = vpack.c.b16 %v422, %v421
      %v432 = vpack.c.b16 %v424, %v423
      %441 = vmatprep.subr.bf16.mxu0 0
      %442 = vmatpush1.bf16.msra.mxu0 %v425
      %443 = vmatprep.subr.bf16.mxu0 0
      %444 = vmatpush1.bf16.msra.mxu0 %v426
      %445 = vmatprep.subr.bf16.mxu0 0
      %446 = vmatpush1.bf16.msra.mxu0 %v427
      %447 = vmatprep.subr.bf16.mxu0 0
      %448 = vmatpush1.bf16.msra.mxu0 %v428
      %449 = vmatprep.subr.bf16.mxu0 0
      %450 = vmatpush1.bf16.msra.mxu0 %v429
      %451 = vmatprep.subr.bf16.mxu0 0
      %452 = vmatpush1.bf16.msra.mxu0 %v430
      %453 = vmatprep.subr.bf16.mxu0 0
      %454 = vmatpush1.bf16.msra.mxu0 %v431
      %455 = vmatprep.subr.bf16.mxu0 0
      %456 = vmatpush1.bf16.msra.mxu0 %v432
      %457 = vmatprep.subr.bf16.mxu0 0
      %458 = vmatpush1.bf16.msra.mxu0 0
      %459 = vmatprep.subr.bf16.mxu0 0
      %460 = vmatpush1.bf16.msra.mxu0 0
      %461 = vmatprep.subr.bf16.mxu0 0
      %462 = vmatpush1.bf16.msra.mxu0 0
      %463 = vmatprep.subr.bf16.mxu0 0
      %464 = vmatpush1.bf16.msra.mxu0 0
      %465 = vmatprep.subr.bf16.mxu0 0
      %466 = vmatpush1.bf16.msra.mxu0 0
      %467 = vmatprep.subr.bf16.mxu0 0
      %468 = vmatpush1.bf16.msra.mxu0 0
      %469 = vmatprep.subr.bf16.mxu0 0
      %470 = vmatpush1.bf16.msra.mxu0 0
      %471 = vmatprep.subr.bf16.mxu0 0
      %472 = vmatpush1.bf16.msra.mxu0 0
      %473 = vmatprep.mubr.bf16.mxu0 0
      %474 = vmatmul.mubr.bf16.gmra.mrb[0].mxu0 %v366
      %v475 = vpop.f32.mrb[0].mxu0
      %v476 = vadd.f32 %v391, %v475
      %v477 = vpop.f32.mrb[0].mxu0
      %v478 = vpop.f32.mrb[0].mxu0
      %v479 = vadd.f32 %v391, %v478
      %v480 = vpop.f32.mrb[0].mxu0
      %481 = vmatprep.mubr.bf16.mxu0 0
      %482 = vmatmul.mubr.bf16.gmra.mrb[0].mxu0 %v367
      %v483 = vpop.f32.mrb[0].mxu0
      %v484 = vadd.f32 %v391, %v483
      %v485 = vpop.f32.mrb[0].mxu0
      %v486 = vpop.f32.mrb[0].mxu0
      %v487 = vadd.f32 %v391, %v486
      %v488 = vpop.f32.mrb[0].mxu0
      %489 = vmatprep.mubr.bf16.mxu0 0
      %490 = vmatmul.mubr.bf16.gmra.mrb[0].mxu0 %v368
      %v491 = vpop.f32.mrb[0].mxu0
      %v492 = vadd.f32 %v391, %v491
      %v493 = vpop.f32.mrb[0].mxu0
      %v494 = vpop.f32.mrb[0].mxu0
      %v495 = vadd.f32 %v391, %v494
      %v496 = vpop.f32.mrb[0].mxu0
      %497 = vmatprep.mubr.bf16.mxu0 0
      %498 = vmatmul.mubr.bf16.gmra.mrb[0].mxu0 %v369
      %v499 = vpop.f32.mrb[0].mxu0
      %v500 = vadd.f32 %v391, %v499
      %v501 = vpop.f32.mrb[0].mxu0
      %v502 = vpop.f32.mrb[0].mxu0
      %v503 = vadd.f32 %v391, %v502
      %v504 = vpop.f32.mrb[0].mxu0
      %505 = vdwg.mxu0
      %vm506 = vcmask 130048
      %507 = vst.msk [vmem:[%s226] sm:$0xff] %vm506, %v476
      %508 = vst.msk [vmem:[%s226 + $0x8] sm:$0xff] %vm506, %v479
      %509 = vst.msk [vmem:[%s226 + $0x10] sm:$0xff] %vm506, %v484
      %510 = vst.msk [vmem:[%s226 + $0x18] sm:$0xff] %vm506, %v487
      %511 = vst.msk [vmem:[%s226 + $0x20] sm:$0xff] %vm506, %v492
      %512 = vst.msk [vmem:[%s226 + $0x28] sm:$0xff] %vm506, %v495
      %513 = vst.msk [vmem:[%s226 + $0x30] sm:$0xff] %vm506, %v500
      %514 = vst.msk [vmem:[%s226 + $0x38] sm:$0xff] %vm506, %v503
      %s515 = smul.u32 8, %s16
      %p516 = scmp.lt.s32.totalorder %s515, 15
      %s517 = scalar_select %p516, %s515, 15
      %s518 = smul.addr %s517, 8
      %s519 = scalar_lea.vmem %s5, %s518
      // Predicated region
      $region41: #{lazy_listener_forward.1} parent=39 // pred_check
        %p520 = pneg %p144
      $region42: #{lazy_listener_forward.1} parent=39 // pred_check_branch
        %522 = sbr.rel (%p520) target = $region44
      $region43: #{lazy_listener_forward.1} parent=39 // pred_region
        %s523 = smul.u32 8, %s16
      $region44: #{lazy_listener_forward.1} parent=39 // pred_fallthru
        _
    $region40: #{lazy_listener_forward.1} parent=5 // pred_fallthru
      _
    %p524 = scmp.le.s32.totalorder 2, %s11
    // Predicated region
    $region45: #{lazy_listener_forward.1} parent=5 // pred_check
      %p525 = pneg %p524
    $region46: #{lazy_listener_forward.1} parent=5 // pred_check_branch
      %527 = sbr.rel (%p525) target = $region48
    $region47: #{lazy_listener_forward.1} parent=5 // pred_region
      %s528 = ssub.s32 %s11, 2
      // Predicated region
      $region49: #{lazy_listener_forward.1} parent=47 // pred_check
        %p529 = pneg %p150
      $region50: #{lazy_listener_forward.1} parent=47 // pred_check_branch
        %531 = sbr.rel (%p529) target = $region52
      $region51: #{lazy_listener_forward.1} parent=47 // pred_region
        %s532 = smul.u32 8, %s17
        %p533 = scmp.lt.s32.totalorder %s532, 15
        %s534 = scalar_select %p533, %s532, 15
        %s535 = smul.addr %s534, 8
        %s536 = scalar_lea.vmem %s5, %s535
      $region52: #{lazy_listener_forward.1} parent=47 // pred_fallthru
        _
    $region48: #{lazy_listener_forward.1} parent=5 // pred_fallthru
      _
  $region6: #{lazy_listener_forward.1} parent=0 // loop_footer
    %s15 = sadd.s32 1, %s11
  $region7: #{lazy_listener_forward.1} parent=0 // loop_footer_branch
    %10 = sbr.rel target = $region3
  $region8: #{lazy_listener_forward.1} parent=0 // loop_exit
    _

</llo_original>
